<compile_context>
chip_gen: v6e
topology: v6e:2x2x1
jax: 0.10.0
libtpu: 0.0.40
codegen_flags: <defaults>
</compile_context>

<pallas_src>
import functools

import jax
import jax.numpy as jnp
from jax import lax
from jax.experimental import pallas as pl
from jax.experimental.pallas import tpu as pltpu


def _birnn_kernel(x_ref, wih_ref, whh_ref, b_ref, out_ref, xp_ref, *, batch, seq):
    """Whole problem resident in VMEM; single invocation (no grid).

    x_ref   : (T*B, S)  f32  time-major-flat input, row = t*B + b
    wih_ref : (S, 2S)   bf16 [Wih_f^T | Wih_b^T]
    whh_ref : (2S, 2S)  bf16 block-diag: [:S,:S]=Whh_f^T, [S:,S:]=Whh_b^T
    b_ref   : (1, 2S)   f32  [b_ih_f+b_hh_f | b_ih_b+b_hh_b]
    out_ref : (B, T*2S) f32  row b, lanes [t*2S:(t+1)*2S] = [fwd_t | bwd_t]
    xp_ref  : (T*B, 2S) f32  scratch: input projections (+ bias)
    """
    B, T = batch, seq
    S = x_ref.shape[-1]
    S2 = 2 * S

    wih = wih_ref[...]
    whh = whh_ref[...]

    # ---- Prologue (off the serial chain) -----------------------------------
    # ONE bf16 MXU matmul projects every timestep for both directions; the
    # pre-summed biases are folded in here so the recurrence body is just
    # matmul + add + tanh.
    xp_ref[...] = (
        jnp.dot(x_ref[...].astype(jnp.bfloat16), wih,
                preferred_element_type=jnp.float32)
        + b_ref[...])

    # Direction-aligned per-step inputs: step i consumes time i for the fwd
    # half (lanes [:S]) and time T-1-i for the bwd half (lanes [S:]).  Static
    # ref-level row loads + one lane concat each, hoisted out of the loop and
    # independent of h (never on the critical path).
    xsteps = []
    for i in range(T):
        xf = xp_ref[i * B:(i + 1) * B, :S]                        # (B, S)
        xb = xp_ref[(T - 1 - i) * B:(T - i) * B, S:]              # (B, S)
        xsteps.append(jnp.concatenate([xf, xb], axis=1))          # (B, 2S)

    # ---- Serial recurrence --------------------------------------------------
    # h = [h_fwd | h_bwd] carried in vregs.  Per step: one K=2S bf16 MXU
    # matmul against the block-diagonal hidden weights (zero cross blocks ->
    # no direction leakage), one VPU add, one EUP tanh.
    h = jnp.zeros((B, S2), jnp.float32)
    hs = []
    for i in range(T):
        hh = jnp.dot(h.astype(jnp.bfloat16), whh,
                     preferred_element_type=jnp.float32)
        h = jnp.tanh(xsteps[i] + hh)
        hs.append(h)

    # ---- Epilogue: assemble once, store once (lane-dense (B, T*2S)) --------
    # hs[i][:, :S] is the fwd hidden at time i; hs[i][:, S:] is the bwd hidden
    # at time T-1-i, so the bwd output for time t is hs[T-1-t][:, S:].
    cols = [jnp.concatenate([hs[t][:, :S], hs[T - 1 - t][:, S:]], axis=1)
            for t in range(T)]                                    # T x (B, 2S)
    out_ref[...] = jnp.concatenate(cols, axis=1)                  # (B, T*2S)


def accum_birnn(x, params):
    """x: (B, T, S) float32. Returns (B, T, 2*S) = concat(fwd, bwd, axis=2)."""
    B, T, S = x.shape
    wih_f, whh_f, b_f, wih_b, whh_b, b_b = params

    # Direction-fused, pre-transposed weights; bf16 operands / f32 accumulation
    # so every matmul is a single MXU pass on v5e/v6e/v7x.
    wih_cat = jnp.concatenate([wih_f.T, wih_b.T], axis=1).astype(jnp.bfloat16)
    whh_blk = jnp.zeros((2 * S, 2 * S), jnp.float32)
    whh_blk = whh_blk.at[:S, :S].set(whh_f.T)       # h_fwd -> fwd cols
    whh_blk = whh_blk.at[S:, S:].set(whh_b.T)       # h_bwd -> bwd cols
    whh_blk = whh_blk.astype(jnp.bfloat16)
    b_cat = jnp.concatenate([b_f, b_b], axis=1)     # (1, 2S) f32

    # Time-major-flat input (row = t*B + b): per-step kernel reads become
    # contiguous row slices and the projection is one 2-D matmul.  This 2 KiB
    # copy is the only wrapper-side data movement; the output needs no
    # transpose or concat (free reshape only).
    x_tm = jnp.transpose(x, (1, 0, 2)).reshape(T * B, S)

    kernel = functools.partial(_birnn_kernel, batch=B, seq=T)
    vmem = functools.partial(pl.BlockSpec, memory_space=pltpu.MemorySpace.VMEM)

    out_flat = pl.pallas_call(
        kernel,
        out_shape=jax.ShapeDtypeStruct((B, T * 2 * S), jnp.float32),
        in_specs=[vmem(), vmem(), vmem(), vmem()],
        out_specs=vmem(),
        scratch_shapes=[pltpu.VMEM((T * B, 2 * S), jnp.float32)],
    )(x_tm, wih_cat, whh_blk, b_cat)

    # Row b of out_flat is [fwd_0|bwd_0|fwd_1|bwd_1|...]; reshape is free.
    return out_flat.reshape(B, T, 2 * S)


# ----------------------- pure-JAX references (independent checks) -----------
def _run_birnn_reference(x, params, cell):
    wih_f, whh_f, b_f, wih_b, whh_b, b_b = params
    B, T, S = x.shape
    h0 = jnp.zeros((B, S), jnp.float32)

    h = h0
    fwd = []
    for t in range(T):
        h = cell(x[:, t], h, wih_f, whh_f, b_f)
        fwd.append(h)
    fwd = jnp.stack(fwd, axis=1)

    h = h0
    bwd = [None] * T
    for t in reversed(range(T)):
        h = cell(x[:, t], h, wih_b, whh_b, b_b)
        bwd[t] = h
    bwd = jnp.stack(bwd, axis=1)

    return jnp.concatenate([fwd, bwd], axis=2)


def _reference_f32(x, params):
    """Ground-truth full-f32 (Precision.HIGHEST) bidirectional RNN."""
    hp = lax.Precision.HIGHEST

    def cell(xt, h, wih, whh, b):
        return jnp.tanh(jnp.dot(xt, wih.T, precision=hp)
                        + jnp.dot(h, whh.T, precision=hp) + b)

    return _run_birnn_reference(x, params, cell)


def _reference_matched(x, params):
    """Same recurrence with the kernel's exact numerics (bf16 matmul operands,
    f32 accumulation, identical bias-add order, f32 tanh) but a completely
    independent per-direction structure -> tight structural check."""
    def cell(xt, h, wih, whh, b):
        zx = jnp.dot(xt.astype(jnp.bfloat16), wih.T.astype(jnp.bfloat16),
                     preferred_element_type=jnp.float32) + b
        zh = jnp.dot(h.astype(jnp.bfloat16), whh.T.astype(jnp.bfloat16),
                     preferred_element_type=jnp.float32)
        return jnp.tanh(zx + zh)

    return _run_birnn_reference(x, params, cell)


if __name__ == "__main__":
    B, T, S = 2, 8, 32     # batch, seq, hidden size (RNNCell(size, size))

    key = jax.random.PRNGKey(0)
    kx, kp = jax.random.split(key)
    keys = jax.random.split(kp, 8)

    bound = 1.0 / jnp.sqrt(S)   # PyTorch RNNCell init: U(-1/sqrt(size), 1/sqrt(size))

    def uni(k, shape):
        return jax.random.uniform(k, shape, jnp.float32, -bound, bound)

    # Forward cell params (b_ih + b_hh pre-summed into a single (1, S) bias).
    wih_f = uni(keys[0], (S, S))
    whh_f = uni(keys[1], (S, S))
    b_f = uni(keys[2], (1, S)) + uni(keys[3], (1, S))
    # Backward cell params.
    wih_b = uni(keys[4], (S, S))
    whh_b = uni(keys[5], (S, S))
    b_b = uni(keys[6], (1, S)) + uni(keys[7], (1, S))

    params = (wih_f, whh_f, b_f, wih_b, whh_b, b_b)
    x = jax.random.normal(kx, (B, T, S), jnp.float32)

    out = jax.block_until_ready(jax.jit(accum_birnn)(x, params))

    ref_tight = _reference_matched(x, params)
    ref_f32 = _reference_f32(x, params)

    assert out.shape == (B, T, 2 * S), out.shape

    # Tight structural check: reference uses the kernel's exact numerics
    # (bf16 operands, f32 accumulation, same add order), so the expected
    # difference is ~1e-6 while any indexing / direction / weight-block / bias
    # bug produces O(0.1..1) errors.
    err_tight = float(jnp.max(jnp.abs(out - ref_tight)))
    assert jnp.allclose(out, ref_tight, atol=1e-3, rtol=1e-3), err_tight

    # Loose numerical sanity check vs. the full-f32 ground truth: bounds the
    # bf16-operand quantization error accumulated over the T-step recurrence.
    err_f32 = float(jnp.max(jnp.abs(out - ref_f32)))
    assert jnp.allclose(out, ref_f32, atol=5e-2, rtol=5e-2), err_f32

    print("KERNEL_OK")
</pallas_src>

<mosaic_0001>
module attributes {stable_mosaic.version = 11 : i64} {
  func.func @_birnn_kernel(%arg0: memref<16x32xf32, #tpu.memory_space<vmem>>, %arg1: memref<32x64xbf16, #tpu.memory_space<vmem>>, %arg2: memref<64x64xbf16, #tpu.memory_space<vmem>>, %arg3: memref<1x64xf32, #tpu.memory_space<vmem>>, %arg4: memref<2x512xf32, #tpu.memory_space<vmem>>, %arg5: memref<16x64xf32, #tpu.memory_space<vmem>>) attributes {dimension_semantics = [], scalar_prefetch = 0 : i64, scratch_operands = 1 : i64, tpu.core_type = #tpu.core_type<tc>} {
    %c0 = arith.constant 0 : index
    %c0_0 = arith.constant 0 : index
    %0 = vector.load %arg1[%c0, %c0_0] : memref<32x64xbf16, #tpu.memory_space<vmem>>, vector<32x64xbf16>
    %c0_1 = arith.constant 0 : index
    %c0_2 = arith.constant 0 : index
    %1 = vector.load %arg2[%c0_1, %c0_2] : memref<64x64xbf16, #tpu.memory_space<vmem>>, vector<64x64xbf16>
    %c0_3 = arith.constant 0 : index
    %c0_4 = arith.constant 0 : index
    %2 = vector.load %arg0[%c0_3, %c0_4] : memref<16x32xf32, #tpu.memory_space<vmem>>, vector<16x32xf32>
    %3 = arith.truncf %2 : vector<16x32xf32> to vector<16x32xbf16>
    %cst = arith.constant dense<0.000000e+00> : vector<16x64xf32>
    %4 = tpu.matmul %3, %0, %cst {dimension_numbers = #tpu.dot_dimension_numbers<[1], [0], [0], [1], [0, 0, 1, 1], [], []>} : vector<16x32xbf16>, vector<32x64xbf16>, vector<16x64xf32> -> vector<16x64xf32>
    %c0_5 = arith.constant 0 : index
    %c0_6 = arith.constant 0 : index
    %5 = vector.load %arg3[%c0_5, %c0_6] : memref<1x64xf32, #tpu.memory_space<vmem>>, vector<1x64xf32>
    %6 = vector.broadcast %5 : vector<1x64xf32> to vector<16x64xf32>
    %7 = arith.addf %4, %6 : vector<16x64xf32>
    %c0_7 = arith.constant 0 : index
    %c0_8 = arith.constant 0 : index
    %8 = vector.load %arg5[%c0_7, %c0_8] : memref<16x64xf32, #tpu.memory_space<vmem>>, vector<16x64xf32>
    tpu.vector_store %arg5[%c0_7, %c0_8], %7 {strides = array<i32>} : memref<16x64xf32, #tpu.memory_space<vmem>>, vector<16x64xf32>,
    %c0_9 = arith.constant 0 : index
    %c0_10 = arith.constant 0 : index
    %9 = vector.load %arg5[%c0_9, %c0_10] : memref<16x64xf32, #tpu.memory_space<vmem>>, vector<2x32xf32>
    %c14 = arith.constant 14 : index
    %c32 = arith.constant 32 : index
    %10 = vector.load %arg5[%c14, %c32] : memref<16x64xf32, #tpu.memory_space<vmem>>, vector<2x32xf32>
    %11 = tpu.concatenate %9, %10 in 1 : vector<2x32xf32>, vector<2x32xf32> -> vector<2x64xf32>
    %c2 = arith.constant 2 : index
    %c0_11 = arith.constant 0 : index
    %12 = vector.load %arg5[%c2, %c0_11] : memref<16x64xf32, #tpu.memory_space<vmem>>, vector<2x32xf32>
    %c12 = arith.constant 12 : index
    %c32_12 = arith.constant 32 : index
    %13 = vector.load %arg5[%c12, %c32_12] : memref<16x64xf32, #tpu.memory_space<vmem>>, vector<2x32xf32>
    %14 = tpu.concatenate %12, %13 in 1 : vector<2x32xf32>, vector<2x32xf32> -> vector<2x64xf32>
    %c4 = arith.constant 4 : index
    %c0_13 = arith.constant 0 : index
    %15 = vector.load %arg5[%c4, %c0_13] : memref<16x64xf32, #tpu.memory_space<vmem>>, vector<2x32xf32>
    %c10 = arith.constant 10 : index
    %c32_14 = arith.constant 32 : index
    %16 = vector.load %arg5[%c10, %c32_14] : memref<16x64xf32, #tpu.memory_space<vmem>>, vector<2x32xf32>
    %17 = tpu.concatenate %15, %16 in 1 : vector<2x32xf32>, vector<2x32xf32> -> vector<2x64xf32>
    %c6 = arith.constant 6 : index
    %c0_15 = arith.constant 0 : index
    %18 = vector.load %arg5[%c6, %c0_15] : memref<16x64xf32, #tpu.memory_space<vmem>>, vector<2x32xf32>
    %c8 = arith.constant 8 : index
    %c32_16 = arith.constant 32 : index
    %19 = vector.load %arg5[%c8, %c32_16] : memref<16x64xf32, #tpu.memory_space<vmem>>, vector<2x32xf32>
    %20 = tpu.concatenate %18, %19 in 1 : vector<2x32xf32>, vector<2x32xf32> -> vector<2x64xf32>
    %c8_17 = arith.constant 8 : index
    %c0_18 = arith.constant 0 : index
    %21 = vector.load %arg5[%c8_17, %c0_18] : memref<16x64xf32, #tpu.memory_space<vmem>>, vector<2x32xf32>
    %c6_19 = arith.constant 6 : index
    %c32_20 = arith.constant 32 : index
    %22 = vector.load %arg5[%c6_19, %c32_20] : memref<16x64xf32, #tpu.memory_space<vmem>>, vector<2x32xf32>
    %23 = tpu.concatenate %21, %22 in 1 : vector<2x32xf32>, vector<2x32xf32> -> vector<2x64xf32>
    %c10_21 = arith.constant 10 : index
    %c0_22 = arith.constant 0 : index
    %24 = vector.load %arg5[%c10_21, %c0_22] : memref<16x64xf32, #tpu.memory_space<vmem>>, vector<2x32xf32>
    %c4_23 = arith.constant 4 : index
    %c32_24 = arith.constant 32 : index
    %25 = vector.load %arg5[%c4_23, %c32_24] : memref<16x64xf32, #tpu.memory_space<vmem>>, vector<2x32xf32>
    %26 = tpu.concatenate %24, %25 in 1 : vector<2x32xf32>, vector<2x32xf32> -> vector<2x64xf32>
    %c12_25 = arith.constant 12 : index
    %c0_26 = arith.constant 0 : index
    %27 = vector.load %arg5[%c12_25, %c0_26] : memref<16x64xf32, #tpu.memory_space<vmem>>, vector<2x32xf32>
    %c2_27 = arith.constant 2 : index
    %c32_28 = arith.constant 32 : index
    %28 = vector.load %arg5[%c2_27, %c32_28] : memref<16x64xf32, #tpu.memory_space<vmem>>, vector<2x32xf32>
    %29 = tpu.concatenate %27, %28 in 1 : vector<2x32xf32>, vector<2x32xf32> -> vector<2x64xf32>
    %c14_29 = arith.constant 14 : index
    %c0_30 = arith.constant 0 : index
    %30 = vector.load %arg5[%c14_29, %c0_30] : memref<16x64xf32, #tpu.memory_space<vmem>>, vector<2x32xf32>
    %c0_31 = arith.constant 0 : index
    %c32_32 = arith.constant 32 : index
    %31 = vector.load %arg5[%c0_31, %c32_32] : memref<16x64xf32, #tpu.memory_space<vmem>>, vector<2x32xf32>
    %32 = tpu.concatenate %30, %31 in 1 : vector<2x32xf32>, vector<2x32xf32> -> vector<2x64xf32>
    %cst_33 = arith.constant 0.000000e+00 : f32
    %33 = vector.broadcast %cst_33 : f32 to vector<2x64xf32>
    %34 = arith.truncf %33 : vector<2x64xf32> to vector<2x64xbf16>
    %cst_34 = arith.constant dense<0.000000e+00> : vector<2x64xf32>
    %35 = tpu.matmul %34, %1, %cst_34 {dimension_numbers = #tpu.dot_dimension_numbers<[1], [0], [0], [1], [0, 0, 1, 1], [], []>} : vector<2x64xbf16>, vector<64x64xbf16>, vector<2x64xf32> -> vector<2x64xf32>
    %36 = arith.addf %11, %35 : vector<2x64xf32>
    %37 = math.tanh %36 : vector<2x64xf32>
    %38 = arith.truncf %37 : vector<2x64xf32> to vector<2x64xbf16>
    %cst_35 = arith.constant dense<0.000000e+00> : vector<2x64xf32>
    %39 = tpu.matmul %38, %1, %cst_35 {dimension_numbers = #tpu.dot_dimension_numbers<[1], [0], [0], [1], [0, 0, 1, 1], [], []>} : vector<2x64xbf16>, vector<64x64xbf16>, vector<2x64xf32> -> vector<2x64xf32>
    %40 = arith.addf %14, %39 : vector<2x64xf32>
    %41 = math.tanh %40 : vector<2x64xf32>
    %42 = arith.truncf %41 : vector<2x64xf32> to vector<2x64xbf16>
    %cst_36 = arith.constant dense<0.000000e+00> : vector<2x64xf32>
    %43 = tpu.matmul %42, %1, %cst_36 {dimension_numbers = #tpu.dot_dimension_numbers<[1], [0], [0], [1], [0, 0, 1, 1], [], []>} : vector<2x64xbf16>, vector<64x64xbf16>, vector<2x64xf32> -> vector<2x64xf32>
    %44 = arith.addf %17, %43 : vector<2x64xf32>
    %45 = math.tanh %44 : vector<2x64xf32>
    %46 = arith.truncf %45 : vector<2x64xf32> to vector<2x64xbf16>
    %cst_37 = arith.constant dense<0.000000e+00> : vector<2x64xf32>
    %47 = tpu.matmul %46, %1, %cst_37 {dimension_numbers = #tpu.dot_dimension_numbers<[1], [0], [0], [1], [0, 0, 1, 1], [], []>} : vector<2x64xbf16>, vector<64x64xbf16>, vector<2x64xf32> -> vector<2x64xf32>
    %48 = arith.addf %20, %47 : vector<2x64xf32>
    %49 = math.tanh %48 : vector<2x64xf32>
    %50 = arith.truncf %49 : vector<2x64xf32> to vector<2x64xbf16>
    %cst_38 = arith.constant dense<0.000000e+00> : vector<2x64xf32>
    %51 = tpu.matmul %50, %1, %cst_38 {dimension_numbers = #tpu.dot_dimension_numbers<[1], [0], [0], [1], [0, 0, 1, 1], [], []>} : vector<2x64xbf16>, vector<64x64xbf16>, vector<2x64xf32> -> vector<2x64xf32>
    %52 = arith.addf %23, %51 : vector<2x64xf32>
    %53 = math.tanh %52 : vector<2x64xf32>
    %54 = arith.truncf %53 : vector<2x64xf32> to vector<2x64xbf16>
    %cst_39 = arith.constant dense<0.000000e+00> : vector<2x64xf32>
    %55 = tpu.matmul %54, %1, %cst_39 {dimension_numbers = #tpu.dot_dimension_numbers<[1], [0], [0], [1], [0, 0, 1, 1], [], []>} : vector<2x64xbf16>, vector<64x64xbf16>, vector<2x64xf32> -> vector<2x64xf32>
    %56 = arith.addf %26, %55 : vector<2x64xf32>
    %57 = math.tanh %56 : vector<2x64xf32>
    %58 = arith.truncf %57 : vector<2x64xf32> to vector<2x64xbf16>
    %cst_40 = arith.constant dense<0.000000e+00> : vector<2x64xf32>
    %59 = tpu.matmul %58, %1, %cst_40 {dimension_numbers = #tpu.dot_dimension_numbers<[1], [0], [0], [1], [0, 0, 1, 1], [], []>} : vector<2x64xbf16>, vector<64x64xbf16>, vector<2x64xf32> -> vector<2x64xf32>
    %60 = arith.addf %29, %59 : vector<2x64xf32>
    %61 = math.tanh %60 : vector<2x64xf32>
    %62 = arith.truncf %61 : vector<2x64xf32> to vector<2x64xbf16>
    %cst_41 = arith.constant dense<0.000000e+00> : vector<2x64xf32>
    %63 = tpu.matmul %62, %1, %cst_41 {dimension_numbers = #tpu.dot_dimension_numbers<[1], [0], [0], [1], [0, 0, 1, 1], [], []>} : vector<2x64xbf16>, vector<64x64xbf16>, vector<2x64xf32> -> vector<2x64xf32>
    %64 = arith.addf %32, %63 : vector<2x64xf32>
    %65 = math.tanh %64 : vector<2x64xf32>
    %66 = vector.extract_strided_slice %37 {offsets = [0, 0], sizes = [2, 32], strides = [1, 1]} : vector<2x64xf32> to vector<2x32xf32>
    %67 = vector.extract_strided_slice %65 {offsets = [0, 32], sizes = [2, 32], strides = [1, 1]} : vector<2x64xf32> to vector<2x32xf32>
    %68 = tpu.concatenate %66, %67 in 1 : vector<2x32xf32>, vector<2x32xf32> -> vector<2x64xf32>
    %69 = vector.extract_strided_slice %41 {offsets = [0, 0], sizes = [2, 32], strides = [1, 1]} : vector<2x64xf32> to vector<2x32xf32>
    %70 = vector.extract_strided_slice %61 {offsets = [0, 32], sizes = [2, 32], strides = [1, 1]} : vector<2x64xf32> to vector<2x32xf32>
    %71 = tpu.concatenate %69, %70 in 1 : vector<2x32xf32>, vector<2x32xf32> -> vector<2x64xf32>
    %72 = vector.extract_strided_slice %45 {offsets = [0, 0], sizes = [2, 32], strides = [1, 1]} : vector<2x64xf32> to vector<2x32xf32>
    %73 = vector.extract_strided_slice %57 {offsets = [0, 32], sizes = [2, 32], strides = [1, 1]} : vector<2x64xf32> to vector<2x32xf32>
    %74 = tpu.concatenate %72, %73 in 1 : vector<2x32xf32>, vector<2x32xf32> -> vector<2x64xf32>
    %75 = vector.extract_strided_slice %49 {offsets = [0, 0], sizes = [2, 32], strides = [1, 1]} : vector<2x64xf32> to vector<2x32xf32>
    %76 = vector.extract_strided_slice %53 {offsets = [0, 32], sizes = [2, 32], strides = [1, 1]} : vector<2x64xf32> to vector<2x32xf32>
    %77 = tpu.concatenate %75, %76 in 1 : vector<2x32xf32>, vector<2x32xf32> -> vector<2x64xf32>
    %78 = vector.extract_strided_slice %53 {offsets = [0, 0], sizes = [2, 32], strides = [1, 1]} : vector<2x64xf32> to vector<2x32xf32>
    %79 = vector.extract_strided_slice %49 {offsets = [0, 32], sizes = [2, 32], strides = [1, 1]} : vector<2x64xf32> to vector<2x32xf32>
    %80 = tpu.concatenate %78, %79 in 1 : vector<2x32xf32>, vector<2x32xf32> -> vector<2x64xf32>
    %81 = vector.extract_strided_slice %57 {offsets = [0, 0], sizes = [2, 32], strides = [1, 1]} : vector<2x64xf32> to vector<2x32xf32>
    %82 = vector.extract_strided_slice %45 {offsets = [0, 32], sizes = [2, 32], strides = [1, 1]} : vector<2x64xf32> to vector<2x32xf32>
    %83 = tpu.concatenate %81, %82 in 1 : vector<2x32xf32>, vector<2x32xf32> -> vector<2x64xf32>
    %84 = vector.extract_strided_slice %61 {offsets = [0, 0], sizes = [2, 32], strides = [1, 1]} : vector<2x64xf32> to vector<2x32xf32>
    %85 = vector.extract_strided_slice %41 {offsets = [0, 32], sizes = [2, 32], strides = [1, 1]} : vector<2x64xf32> to vector<2x32xf32>
    %86 = tpu.concatenate %84, %85 in 1 : vector<2x32xf32>, vector<2x32xf32> -> vector<2x64xf32>
    %87 = vector.extract_strided_slice %65 {offsets = [0, 0], sizes = [2, 32], strides = [1, 1]} : vector<2x64xf32> to vector<2x32xf32>
    %88 = vector.extract_strided_slice %37 {offsets = [0, 32], sizes = [2, 32], strides = [1, 1]} : vector<2x64xf32> to vector<2x32xf32>
    %89 = tpu.concatenate %87, %88 in 1 : vector<2x32xf32>, vector<2x32xf32> -> vector<2x64xf32>
    %90 = tpu.concatenate %68, %71, %74, %77, %80, %83, %86, %89 in 1 : vector<2x64xf32>, vector<2x64xf32>, vector<2x64xf32>, vector<2x64xf32>, vector<2x64xf32>, vector<2x64xf32>, vector<2x64xf32>, vector<2x64xf32> -> vector<2x512xf32>
    %c0_42 = arith.constant 0 : index
    %c0_43 = arith.constant 0 : index
    %91 = vector.load %arg4[%c0_42, %c0_43] : memref<2x512xf32, #tpu.memory_space<vmem>>, vector<2x512xf32>
    tpu.vector_store %arg4[%c0_42, %c0_43], %90 {strides = array<i32>} : memref<2x512xf32, #tpu.memory_space<vmem>>, vector<2x512xf32>,
    return
  }
}

</mosaic_0001>

<llo_original>
// kernel: accum_birnn.1
$region0: #{accum_birnn.1}
  #allocation0 [shape = 'u32[]', space=smem, size = 0x4, offset = 0x4, fixed_abs, tag = 'smem constant byte address 0x4 - core index']
  #allocation1 [shape = 'u32[144,128]{1,0:T(1,128)}', space=vmem, size = 0x12000, scoped, tag = 'internal scratch']
  #allocation2 [shape = 'f32[16,64]{1,0:T(8,128)}', space=vmem, size = 0x2000, scoped, tag = 'scratch operand']
  %s0 = inlined_call_operand.vmem [shape: f32[16,32], index: 0, kind: input, shape index: {}]
  %s1 = inlined_call_operand.vmem [shape: bf16[32,64], index: 1, kind: input, shape index: {}]
  %s2 = inlined_call_operand.vmem [shape: bf16[64,64], index: 2, kind: input, shape index: {}]
  %s3 = inlined_call_operand.vmem [shape: f32[1,64], index: 3, kind: input, shape index: {}]
  %s4 = inlined_call_operand.vmem [shape: f32[2,512], index: 4, kind: output, shape index: {}]
  %s5 = sld [smem:[#allocation0]]
  $region26: #{accum_birnn.1} parent=0
    _
  %s7 = ssub.s32 1, %s5
  %s8 = scalar_select 0, %s7, %s5
  // Predicated region
  $region2: #{accum_birnn.1} parent=0 // pred_check
    _
  $region3: #{accum_birnn.1} parent=0 // pred_check_branch
    %10 = sbr.rel (0) target = $region5
  $region4: #{accum_birnn.1} parent=0 // pred_region
    _
  $region5: #{accum_birnn.1} parent=0 // pred_fallthru
    _
  // Predicated region
  $region6: #{accum_birnn.1} parent=0 // pred_check
    _
  $region7: #{accum_birnn.1} parent=0 // pred_check_branch
    %12 = sbr.rel (0) target = $region9
  $region8: #{accum_birnn.1} parent=0 // pred_region
    _
  $region9: #{accum_birnn.1} parent=0 // pred_fallthru
    _
  // Predicated region
  $region10: #{accum_birnn.1} parent=0 // pred_check
    _
  $region11: #{accum_birnn.1} parent=0 // pred_check_branch
    %14 = sbr.rel (0) target = $region13
  $region12: #{accum_birnn.1} parent=0 // pred_region
    _
  $region13: #{accum_birnn.1} parent=0 // pred_fallthru
    _
  // Predicated region
  $region14: #{accum_birnn.1} parent=0 // pred_check
    _
  $region15: #{accum_birnn.1} parent=0 // pred_check_branch
    %16 = sbr.rel (0) target = $region17
  $region16: #{accum_birnn.1} parent=0 // pred_region
    _
  $region17: #{accum_birnn.1} parent=0 // pred_fallthru
    _
  %v18 = vld [vmem:[%s1] sm:$0xf]
  %v19 = vld [vmem:[%s1 + $0x4] sm:$0xf]
  %v20 = vld [vmem:[%s1 + $0x8] sm:$0xf]
  %v21 = vld [vmem:[%s1 + $0xc] sm:$0xf]
  %v22 = vld [vmem:[%s2] sm:$0xf]
  %v23 = vld [vmem:[%s2 + $0x4] sm:$0xf]
  %v24 = vld [vmem:[%s2 + $0x8] sm:$0xf]
  %v25 = vld [vmem:[%s2 + $0xc] sm:$0xf]
  %v26 = vld [vmem:[%s2 + $0x10] sm:$0xf]
  %v27 = vld [vmem:[%s2 + $0x14] sm:$0xf]
  %v28 = vld [vmem:[%s2 + $0x18] sm:$0xf]
  %v29 = vld [vmem:[%s2 + $0x1c] sm:$0xf]
  %v30 = vld [vmem:[%s0] sm:$0xff]
  %v31 = vld [vmem:[%s0 + $0x8] sm:$0xff]
  %v32 = vpack.c.bf16 %v31, %v30
  %v33 = vld [vmem:[%s3] sm:$0x1]
  %v35 = vlaneseq
  %v36 = vshrl.u32 %v35, 7
  %v37 = vsub.s32 0, %v36
  %v38 = vrot.slane %v33, %v37
  %v44 = vunpack.c.l.b16 %v18
  %v45 = vunpack.c.l.b16 %v19
  %v46 = vunpack.c.l.b16 %v20
  %v47 = vunpack.c.l.b16 %v21
  %v48 = vpack.c.b16 %v45, %v44
  %v49 = vpack.c.b16 %v47, %v46
  %vm52 = vcmask 261120
  %v54 = vsel %vm52, %v32, 0
  %56 = vmatprep.subr.bf16.mxu0 0
  %57 = vmatpush1.bf16.msra.mxu0 0
  %58 = vmatprep.subr.bf16.mxu0 0
  %59 = vmatpush1.bf16.msra.mxu0 0
  %60 = vmatprep.subr.bf16.mxu0 0
  %61 = vmatpush1.bf16.msra.mxu0 0
  %62 = vmatprep.subr.bf16.mxu0 0
  %63 = vmatpush1.bf16.msra.mxu0 0
  %64 = vmatprep.subr.bf16.mxu0 0
  %65 = vmatpush1.bf16.msra.mxu0 0
  %66 = vmatprep.subr.bf16.mxu0 0
  %67 = vmatpush1.bf16.msra.mxu0 0
  %68 = vmatprep.subr.bf16.mxu0 0
  %69 = vmatpush1.bf16.msra.mxu0 %v49
  %70 = vmatprep.subr.bf16.mxu0 0
  %71 = vmatpush1.bf16.msra.mxu0 %v48
  %72 = vmatprep.subr.bf16.mxu0 0
  %73 = vmatpush2.bf16.msra.mxu0 0
  %74 = vmatprep.subr.bf16.mxu0 0
  %75 = vmatpush2.bf16.msra.mxu0 0
  %76 = vmatprep.subr.bf16.mxu0 0
  %77 = vmatpush2.bf16.msra.mxu0 0
  %78 = vmatprep.subr.bf16.mxu0 0
  %79 = vmatpush2.bf16.msra.mxu0 0
  %80 = vmatprep.subr.bf16.mxu0 0
  %81 = vmatpush2.bf16.msra.mxu0 0
  %82 = vmatprep.subr.bf16.mxu0 0
  %83 = vmatpush2.bf16.msra.mxu0 0
  %84 = vmatprep.subr.bf16.mxu0 0
  %85 = vmatpush2.bf16.msra.mxu0 0
  %86 = vmatprep.subr.bf16.mxu0 0
  %87 = vmatpush2.bf16.msra.mxu0 0
  %88 = vmatprep.mubr.bf16.mxu0 0
  %89 = vmatmul.mubr.bf16.gmra.mxu0 %v54
  %v90 = vpop.f32.mrf.mxu0
  %v91 = vadd.f32 %v38, %v90
  %v92 = vpop.f32.mrf.mxu0
  %v93 = vpop.f32.mrf.mxu0
  %v94 = vadd.f32 %v38, %v93
  %v95 = vpop.f32.mrf.mxu0
  %96 = vdwg.mxu0
  %vm97 = vcmask 523264
  %98 = vst.msk [vmem:[#allocation2] sm:$0xff] %vm97, %v91
  %99 = vst.msk [vmem:[#allocation2 + $0x8] sm:$0xff] %vm97, %v94
  %v100 = vld [vmem:[#allocation2] sm:$0x3]
  %v101 = vld [vmem:[#allocation2 + $0xe] sm:$0x3]
  %v102 = vsel %vm52, %v100, %v101
  %v103 = vld [vmem:[#allocation2 + $0x2] sm:$0x3]
  %v104 = vld [vmem:[#allocation2 + $0xc] sm:$0x3]
  %v105 = vsel %vm52, %v103, %v104
  %v106 = vld [vmem:[#allocation2 + $0x4] sm:$0x3]
  %v107 = vld [vmem:[#allocation2 + $0xa] sm:$0x3]
  %v108 = vsel %vm52, %v106, %v107
  %v109 = vld [vmem:[#allocation2 + $0x6] sm:$0x3]
  %v110 = vld [vmem:[#allocation2 + $0x8] sm:$0x3]
  %v111 = vsel %vm52, %v109, %v110
  %v112 = vsel %vm52, %v110, %v109
  %v113 = vsel %vm52, %v107, %v106
  %v114 = vsel %vm52, %v104, %v103
  %v115 = vsel %vm52, %v101, %v100
  %v124 = vunpack.c.l.b16 %v22
  %v125 = vunpack.c.l.b16 %v23
  %v126 = vunpack.c.l.b16 %v24
  %v127 = vunpack.c.l.b16 %v25
  %v128 = vunpack.c.l.b16 %v26
  %v129 = vunpack.c.l.b16 %v27
  %v130 = vunpack.c.l.b16 %v28
  %v131 = vunpack.c.l.b16 %v29
  %v132 = vpack.c.b16 %v125, %v124
  %v133 = vpack.c.b16 %v127, %v126
  %v134 = vpack.c.b16 %v129, %v128
  %v135 = vpack.c.b16 %v131, %v130
  %v141 = vsel %vm97, 0, 0
  %143 = vmatprep.subr.bf16.mxu0 0
  %144 = vmatpush1.bf16.msra.mxu0 0
  %145 = vmatprep.subr.bf16.mxu0 0
  %146 = vmatpush1.bf16.msra.mxu0 0
  %147 = vmatprep.subr.bf16.mxu0 0
  %148 = vmatpush1.bf16.msra.mxu0 0
  %149 = vmatprep.subr.bf16.mxu0 0
  %150 = vmatpush1.bf16.msra.mxu0 0
  %151 = vmatprep.subr.bf16.mxu0 0
  %152 = vmatpush1.bf16.msra.mxu0 %v135
  %153 = vmatprep.subr.bf16.mxu0 0
  %154 = vmatpush1.bf16.msra.mxu0 %v134
  %155 = vmatprep.subr.bf16.mxu0 0
  %156 = vmatpush1.bf16.msra.mxu0 %v133
  %157 = vmatprep.subr.bf16.mxu0 0
  %158 = vmatpush1.bf16.msra.mxu0 %v132
  %159 = vmatprep.subr.bf16.mxu0 0
  %160 = vmatpush2.bf16.msra.mxu0 0
  %161 = vmatprep.subr.bf16.mxu0 0
  %162 = vmatpush2.bf16.msra.mxu0 0
  %163 = vmatprep.subr.bf16.mxu0 0
  %164 = vmatpush2.bf16.msra.mxu0 0
  %165 = vmatprep.subr.bf16.mxu0 0
  %166 = vmatpush2.bf16.msra.mxu0 0
  %167 = vmatprep.subr.bf16.mxu0 0
  %168 = vmatpush2.bf16.msra.mxu0 0
  %169 = vmatprep.subr.bf16.mxu0 0
  %170 = vmatpush2.bf16.msra.mxu0 0
  %171 = vmatprep.subr.bf16.mxu0 0
  %172 = vmatpush2.bf16.msra.mxu0 0
  %173 = vmatprep.subr.bf16.mxu0 0
  %174 = vmatpush2.bf16.msra.mxu0 0
  %175 = vmatprep.mubr.bf16.mxu0 0
  %176 = vmatmul.mubr.bf16.gmra.mxu0 %v141
  %v177 = vpop.f32.mrf.mxu0
  %v178 = vadd.f32 0.0, %v177
  %v179 = vpop.f32.mrf.mxu0
  %v180 = vpop.f32.mrf.mxu0
  %v181 = vpop.f32.mrf.mxu0
  %182 = vdwg.mxu0
  %v183 = vadd.f32 %v102, %v178
  %v184 = vtanh.pop %v183
  %v185 = vpack.c.bf16 %v184, %v184
  %v187 = vsel %vm97, %v185, 0
  %189 = vmatprep.subr.bf16.mxu0 0
  %190 = vmatpush1.bf16.msra.mxu0 0
  %191 = vmatprep.subr.bf16.mxu0 0
  %192 = vmatpush1.bf16.msra.mxu0 0
  %193 = vmatprep.subr.bf16.mxu0 0
  %194 = vmatpush1.bf16.msra.mxu0 0
  %195 = vmatprep.subr.bf16.mxu0 0
  %196 = vmatpush1.bf16.msra.mxu0 0
  %197 = vmatprep.subr.bf16.mxu0 0
  %198 = vmatpush1.bf16.msra.mxu0 %v135
  %199 = vmatprep.subr.bf16.mxu0 0
  %200 = vmatpush1.bf16.msra.mxu0 %v134
  %201 = vmatprep.subr.bf16.mxu0 0
  %202 = vmatpush1.bf16.msra.mxu0 %v133
  %203 = vmatprep.subr.bf16.mxu0 0
  %204 = vmatpush1.bf16.msra.mxu0 %v132
  %205 = vmatprep.subr.bf16.mxu0 0
  %206 = vmatpush2.bf16.msra.mxu0 0
  %207 = vmatprep.subr.bf16.mxu0 0
  %208 = vmatpush2.bf16.msra.mxu0 0
  %209 = vmatprep.subr.bf16.mxu0 0
  %210 = vmatpush2.bf16.msra.mxu0 0
  %211 = vmatprep.subr.bf16.mxu0 0
  %212 = vmatpush2.bf16.msra.mxu0 0
  %213 = vmatprep.subr.bf16.mxu0 0
  %214 = vmatpush2.bf16.msra.mxu0 0
  %215 = vmatprep.subr.bf16.mxu0 0
  %216 = vmatpush2.bf16.msra.mxu0 0
  %217 = vmatprep.subr.bf16.mxu0 0
  %218 = vmatpush2.bf16.msra.mxu0 0
  %219 = vmatprep.subr.bf16.mxu0 0
  %220 = vmatpush2.bf16.msra.mxu0 0
  %221 = vmatprep.mubr.bf16.mxu0 0
  %222 = vmatmul.mubr.bf16.gmra.mxu0 %v187
  %v223 = vpop.f32.mrf.mxu0
  %v224 = vadd.f32 0.0, %v223
  %v225 = vpop.f32.mrf.mxu0
  %v226 = vpop.f32.mrf.mxu0
  %v227 = vpop.f32.mrf.mxu0
  %228 = vdwg.mxu0
  %v229 = vadd.f32 %v105, %v224
  %v230 = vtanh.pop %v229
  %v231 = vpack.c.bf16 %v230, %v230
  %v233 = vsel %vm97, %v231, 0
  %235 = vmatprep.subr.bf16.mxu0 0
  %236 = vmatpush1.bf16.msra.mxu0 0
  %237 = vmatprep.subr.bf16.mxu0 0
  %238 = vmatpush1.bf16.msra.mxu0 0
  %239 = vmatprep.subr.bf16.mxu0 0
  %240 = vmatpush1.bf16.msra.mxu0 0
  %241 = vmatprep.subr.bf16.mxu0 0
  %242 = vmatpush1.bf16.msra.mxu0 0
  %243 = vmatprep.subr.bf16.mxu0 0
  %244 = vmatpush1.bf16.msra.mxu0 %v135
  %245 = vmatprep.subr.bf16.mxu0 0
  %246 = vmatpush1.bf16.msra.mxu0 %v134
  %247 = vmatprep.subr.bf16.mxu0 0
  %248 = vmatpush1.bf16.msra.mxu0 %v133
  %249 = vmatprep.subr.bf16.mxu0 0
  %250 = vmatpush1.bf16.msra.mxu0 %v132
  %251 = vmatprep.subr.bf16.mxu0 0
  %252 = vmatpush2.bf16.msra.mxu0 0
  %253 = vmatprep.subr.bf16.mxu0 0
  %254 = vmatpush2.bf16.msra.mxu0 0
  %255 = vmatprep.subr.bf16.mxu0 0
  %256 = vmatpush2.bf16.msra.mxu0 0
  %257 = vmatprep.subr.bf16.mxu0 0
  %258 = vmatpush2.bf16.msra.mxu0 0
  %259 = vmatprep.subr.bf16.mxu0 0
  %260 = vmatpush2.bf16.msra.mxu0 0
  %261 = vmatprep.subr.bf16.mxu0 0
  %262 = vmatpush2.bf16.msra.mxu0 0
  %263 = vmatprep.subr.bf16.mxu0 0
  %264 = vmatpush2.bf16.msra.mxu0 0
  %265 = vmatprep.subr.bf16.mxu0 0
  %266 = vmatpush2.bf16.msra.mxu0 0
  %267 = vmatprep.mubr.bf16.mxu0 0
  %268 = vmatmul.mubr.bf16.gmra.mxu0 %v233
  %v269 = vpop.f32.mrf.mxu0
  %v270 = vadd.f32 0.0, %v269
  %v271 = vpop.f32.mrf.mxu0
  %v272 = vpop.f32.mrf.mxu0
  %v273 = vpop.f32.mrf.mxu0
  %274 = vdwg.mxu0
  %v275 = vadd.f32 %v108, %v270
  %v276 = vtanh.pop %v275
  %v277 = vpack.c.bf16 %v276, %v276
  %v279 = vsel %vm97, %v277, 0
  %281 = vmatprep.subr.bf16.mxu0 0
  %282 = vmatpush1.bf16.msra.mxu0 0
  %283 = vmatprep.subr.bf16.mxu0 0
  %284 = vmatpush1.bf16.msra.mxu0 0
  %285 = vmatprep.subr.bf16.mxu0 0
  %286 = vmatpush1.bf16.msra.mxu0 0
  %287 = vmatprep.subr.bf16.mxu0 0
  %288 = vmatpush1.bf16.msra.mxu0 0
  %289 = vmatprep.subr.bf16.mxu0 0
  %290 = vmatpush1.bf16.msra.mxu0 %v135
  %291 = vmatprep.subr.bf16.mxu0 0
  %292 = vmatpush1.bf16.msra.mxu0 %v134
  %293 = vmatprep.subr.bf16.mxu0 0
  %294 = vmatpush1.bf16.msra.mxu0 %v133
  %295 = vmatprep.subr.bf16.mxu0 0
  %296 = vmatpush1.bf16.msra.mxu0 %v132
  %297 = vmatprep.subr.bf16.mxu0 0
  %298 = vmatpush2.bf16.msra.mxu0 0
  %299 = vmatprep.subr.bf16.mxu0 0
  %300 = vmatpush2.bf16.msra.mxu0 0
  %301 = vmatprep.subr.bf16.mxu0 0
  %302 = vmatpush2.bf16.msra.mxu0 0
  %303 = vmatprep.subr.bf16.mxu0 0
  %304 = vmatpush2.bf16.msra.mxu0 0
  %305 = vmatprep.subr.bf16.mxu0 0
  %306 = vmatpush2.bf16.msra.mxu0 0
  %307 = vmatprep.subr.bf16.mxu0 0
  %308 = vmatpush2.bf16.msra.mxu0 0
  %309 = vmatprep.subr.bf16.mxu0 0
  %310 = vmatpush2.bf16.msra.mxu0 0
  %311 = vmatprep.subr.bf16.mxu0 0
  %312 = vmatpush2.bf16.msra.mxu0 0
  %313 = vmatprep.mubr.bf16.mxu0 0
  %314 = vmatmul.mubr.bf16.gmra.mxu0 %v279
  %v315 = vpop.f32.mrf.mxu0
  %v316 = vadd.f32 0.0, %v315
  %v317 = vpop.f32.mrf.mxu0
  %v318 = vpop.f32.mrf.mxu0
  %v319 = vpop.f32.mrf.mxu0
  %320 = vdwg.mxu0
  %v321 = vadd.f32 %v111, %v316
  %v322 = vtanh.pop %v321
  %v323 = vpack.c.bf16 %v322, %v322
  %v325 = vsel %vm97, %v323, 0
  %327 = vmatprep.subr.bf16.mxu0 0
  %328 = vmatpush1.bf16.msra.mxu0 0
  %329 = vmatprep.subr.bf16.mxu0 0
  %330 = vmatpush1.bf16.msra.mxu0 0
  %331 = vmatprep.subr.bf16.mxu0 0
  %332 = vmatpush1.bf16.msra.mxu0 0
  %333 = vmatprep.subr.bf16.mxu0 0
  %334 = vmatpush1.bf16.msra.mxu0 0
  %335 = vmatprep.subr.bf16.mxu0 0
  %336 = vmatpush1.bf16.msra.mxu0 %v135
  %337 = vmatprep.subr.bf16.mxu0 0
  %338 = vmatpush1.bf16.msra.mxu0 %v134
  %339 = vmatprep.subr.bf16.mxu0 0
  %340 = vmatpush1.bf16.msra.mxu0 %v133
  %341 = vmatprep.subr.bf16.mxu0 0
  %342 = vmatpush1.bf16.msra.mxu0 %v132
  %343 = vmatprep.subr.bf16.mxu0 0
  %344 = vmatpush2.bf16.msra.mxu0 0
  %345 = vmatprep.subr.bf16.mxu0 0
  %346 = vmatpush2.bf16.msra.mxu0 0
  %347 = vmatprep.subr.bf16.mxu0 0
  %348 = vmatpush2.bf16.msra.mxu0 0
  %349 = vmatprep.subr.bf16.mxu0 0
  %350 = vmatpush2.bf16.msra.mxu0 0
  %351 = vmatprep.subr.bf16.mxu0 0
  %352 = vmatpush2.bf16.msra.mxu0 0
  %353 = vmatprep.subr.bf16.mxu0 0
  %354 = vmatpush2.bf16.msra.mxu0 0
  %355 = vmatprep.subr.bf16.mxu0 0
  %356 = vmatpush2.bf16.msra.mxu0 0
  %357 = vmatprep.subr.bf16.mxu0 0
  %358 = vmatpush2.bf16.msra.mxu0 0
  %359 = vmatprep.mubr.bf16.mxu0 0
  %360 = vmatmul.mubr.bf16.gmra.mxu0 %v325
  %v361 = vpop.f32.mrf.mxu0
  %v362 = vadd.f32 0.0, %v361
  %v363 = vpop.f32.mrf.mxu0
  %v364 = vpop.f32.mrf.mxu0
  %v365 = vpop.f32.mrf.mxu0
  %366 = vdwg.mxu0
  %v367 = vadd.f32 %v112, %v362
  %v368 = vtanh.pop %v367
  %v369 = vpack.c.bf16 %v368, %v368
  %v371 = vsel %vm97, %v369, 0
  %373 = vmatprep.subr.bf16.mxu0 0
  %374 = vmatpush1.bf16.msra.mxu0 0
  %375 = vmatprep.subr.bf16.mxu0 0
  %376 = vmatpush1.bf16.msra.mxu0 0
  %377 = vmatprep.subr.bf16.mxu0 0
  %378 = vmatpush1.bf16.msra.mxu0 0
  %379 = vmatprep.subr.bf16.mxu0 0
  %380 = vmatpush1.bf16.msra.mxu0 0
  %381 = vmatprep.subr.bf16.mxu0 0
  %382 = vmatpush1.bf16.msra.mxu0 %v135
  %383 = vmatprep.subr.bf16.mxu0 0
  %384 = vmatpush1.bf16.msra.mxu0 %v134
  %385 = vmatprep.subr.bf16.mxu0 0
  %386 = vmatpush1.bf16.msra.mxu0 %v133
  %387 = vmatprep.subr.bf16.mxu0 0
  %388 = vmatpush1.bf16.msra.mxu0 %v132
  %389 = vmatprep.subr.bf16.mxu0 0
  %390 = vmatpush2.bf16.msra.mxu0 0
  %391 = vmatprep.subr.bf16.mxu0 0
  %392 = vmatpush2.bf16.msra.mxu0 0
  %393 = vmatprep.subr.bf16.mxu0 0
  %394 = vmatpush2.bf16.msra.mxu0 0
  %395 = vmatprep.subr.bf16.mxu0 0
  %396 = vmatpush2.bf16.msra.mxu0 0
  %397 = vmatprep.subr.bf16.mxu0 0
  %398 = vmatpush2.bf16.msra.mxu0 0
  %399 = vmatprep.subr.bf16.mxu0 0
  %400 = vmatpush2.bf16.msra.mxu0 0
  %401 = vmatprep.subr.bf16.mxu0 0
  %402 = vmatpush2.bf16.msra.mxu0 0
  %403 = vmatprep.subr.bf16.mxu0 0
  %404 = vmatpush2.bf16.msra.mxu0 0
  %405 = vmatprep.mubr.bf16.mxu0 0
  %406 = vmatmul.mubr.bf16.gmra.mxu0 %v371
  %v407 = vpop.f32.mrf.mxu0
  %v408 = vadd.f32 0.0, %v407
  %v409 = vpop.f32.mrf.mxu0
  %v410 = vpop.f32.mrf.mxu0
  %v411 = vpop.f32.mrf.mxu0
  %412 = vdwg.mxu0
  %v413 = vadd.f32 %v113, %v408
  %v414 = vtanh.pop %v413
  %v415 = vpack.c.bf16 %v414, %v414
  %v417 = vsel %vm97, %v415, 0
  %419 = vmatprep.subr.bf16.mxu0 0
  %420 = vmatpush1.bf16.msra.mxu0 0
  %421 = vmatprep.subr.bf16.mxu0 0
  %422 = vmatpush1.bf16.msra.mxu0 0
  %423 = vmatprep.subr.bf16.mxu0 0
  %424 = vmatpush1.bf16.msra.mxu0 0
  %425 = vmatprep.subr.bf16.mxu0 0
  %426 = vmatpush1.bf16.msra.mxu0 0
  %427 = vmatprep.subr.bf16.mxu0 0
  %428 = vmatpush1.bf16.msra.mxu0 %v135
  %429 = vmatprep.subr.bf16.mxu0 0
  %430 = vmatpush1.bf16.msra.mxu0 %v134
  %431 = vmatprep.subr.bf16.mxu0 0
  %432 = vmatpush1.bf16.msra.mxu0 %v133
  %433 = vmatprep.subr.bf16.mxu0 0
  %434 = vmatpush1.bf16.msra.mxu0 %v132
  %435 = vmatprep.subr.bf16.mxu0 0
  %436 = vmatpush2.bf16.msra.mxu0 0
  %437 = vmatprep.subr.bf16.mxu0 0
  %438 = vmatpush2.bf16.msra.mxu0 0
  %439 = vmatprep.subr.bf16.mxu0 0
  %440 = vmatpush2.bf16.msra.mxu0 0
  %441 = vmatprep.subr.bf16.mxu0 0
  %442 = vmatpush2.bf16.msra.mxu0 0
  %443 = vmatprep.subr.bf16.mxu0 0
  %444 = vmatpush2.bf16.msra.mxu0 0
  %445 = vmatprep.subr.bf16.mxu0 0
  %446 = vmatpush2.bf16.msra.mxu0 0
  %447 = vmatprep.subr.bf16.mxu0 0
  %448 = vmatpush2.bf16.msra.mxu0 0
  %449 = vmatprep.subr.bf16.mxu0 0
  %450 = vmatpush2.bf16.msra.mxu0 0
  %451 = vmatprep.mubr.bf16.mxu0 0
  %452 = vmatmul.mubr.bf16.gmra.mxu0 %v417
  %v453 = vpop.f32.mrf.mxu0
  %v454 = vadd.f32 0.0, %v453
  %v455 = vpop.f32.mrf.mxu0
  %v456 = vpop.f32.mrf.mxu0
  %v457 = vpop.f32.mrf.mxu0
  %458 = vdwg.mxu0
  %v459 = vadd.f32 %v114, %v454
  %v460 = vtanh.pop %v459
  %v461 = vpack.c.bf16 %v460, %v460
  %v463 = vsel %vm97, %v461, 0
  %465 = vmatprep.subr.bf16.mxu0 0
  %466 = vmatpush1.bf16.msra.mxu0 0
  %467 = vmatprep.subr.bf16.mxu0 0
  %468 = vmatpush1.bf16.msra.mxu0 0
  %469 = vmatprep.subr.bf16.mxu0 0
  %470 = vmatpush1.bf16.msra.mxu0 0
  %471 = vmatprep.subr.bf16.mxu0 0
  %472 = vmatpush1.bf16.msra.mxu0 0
  %473 = vmatprep.subr.bf16.mxu0 0
  %474 = vmatpush1.bf16.msra.mxu0 %v135
  %475 = vmatprep.subr.bf16.mxu0 0
  %476 = vmatpush1.bf16.msra.mxu0 %v134
  %477 = vmatprep.subr.bf16.mxu0 0
  %478 = vmatpush1.bf16.msra.mxu0 %v133
  %479 = vmatprep.subr.bf16.mxu0 0
  %480 = vmatpush1.bf16.msra.mxu0 %v132
  %481 = vmatprep.subr.bf16.mxu0 0
  %482 = vmatpush2.bf16.msra.mxu0 0
  %483 = vmatprep.subr.bf16.mxu0 0
  %484 = vmatpush2.bf16.msra.mxu0 0
  %485 = vmatprep.subr.bf16.mxu0 0
  %486 = vmatpush2.bf16.msra.mxu0 0
  %487 = vmatprep.subr.bf16.mxu0 0
  %488 = vmatpush2.bf16.msra.mxu0 0
  %489 = vmatprep.subr.bf16.mxu0 0
  %490 = vmatpush2.bf16.msra.mxu0 0
  %491 = vmatprep.subr.bf16.mxu0 0
  %492 = vmatpush2.bf16.msra.mxu0 0
  %493 = vmatprep.subr.bf16.mxu0 0
  %494 = vmatpush2.bf16.msra.mxu0 0
  %495 = vmatprep.subr.bf16.mxu0 0
  %496 = vmatpush2.bf16.msra.mxu0 0
  %497 = vmatprep.mubr.bf16.mxu0 0
  %498 = vmatmul.mubr.bf16.gmra.mxu0 %v463
  %v499 = vpop.f32.mrf.mxu0
  %v500 = vadd.f32 0.0, %v499
  %v501 = vpop.f32.mrf.mxu0
  %v502 = vpop.f32.mrf.mxu0
  %v503 = vpop.f32.mrf.mxu0
  %504 = vdwg.mxu0
  %v505 = vadd.f32 %v115, %v500
  %v506 = vtanh.pop %v505
  %v507 = vsel %vm52, %v184, %v506
  %v508 = vsel %vm52, %v230, %v460
  %v509 = vsel %vm52, %v276, %v414
  %v510 = vsel %vm52, %v322, %v368
  %v511 = vsel %vm52, %v368, %v322
  %v512 = vsel %vm52, %v414, %v276
  %v513 = vsel %vm52, %v460, %v230
  %v514 = vsel %vm52, %v506, %v184
  %516 = vrot.lane.b32.xlu0 %v508, 64
  %v517 = vpop.permute.xlu0 %516
  %520 = vrot.lane.b32.xlu0 %v510, 64
  %v521 = vpop.permute.xlu0 %520
  %524 = vrot.lane.b32.xlu0 %v512, 64
  %v525 = vpop.permute.xlu0 %524
  %528 = vrot.lane.b32.xlu0 %v514, 64
  %v529 = vpop.permute.xlu0 %528
  %v531 = vsel %vm97, %v507, %v517
  %v532 = vsel %vm97, %v509, %v521
  %v533 = vsel %vm97, %v511, %v525
  %v534 = vsel %vm97, %v513, %v529
  %v539 = vcombine.low %v531, %v532
  %v540 = vcombine.low %v533, %v534
  %v542 = vunpack.c.l.s4 1983009808
  %v543 = vunpack.c.0.s8 %v542
  %v544 = vlaneseq
  %v545 = vshrl.u32 %v544, 7
  %v546 = vsub.s32 %v543, %v545
  %v547 = vrot.slane %v539, %v546
  %v549 = vunpack.c.l.s4 1983009808
  %v550 = vunpack.c.0.s8 %v549
  %v551 = vlaneseq
  %v552 = vshrl.u32 %v551, 7
  %v553 = vsub.s32 %v550, %v552
  %v554 = vrot.slane %v540, %v553
  %v555 = vcombine.low %v547, %v554
  %557 = vst [vmem:[%s4] sm:$0xff] %v555
  // Predicated region
  $region18: #{accum_birnn.1} parent=0 // pred_check
    _
  $region19: #{accum_birnn.1} parent=0 // pred_check_branch
    %559 = sbr.rel (0) target = $region21
  $region20: #{accum_birnn.1} parent=0 // pred_region
    _
  $region21: #{accum_birnn.1} parent=0 // pred_fallthru
    _
  // Predicated region
  $region22: #{accum_birnn.1} parent=0 // pred_check
    _
  $region23: #{accum_birnn.1} parent=0 // pred_check_branch
    %561 = sbr.rel (0) target = $region25
  $region24: #{accum_birnn.1} parent=0 // pred_region
    _
  $region25: #{accum_birnn.1} parent=0 // pred_fallthru
    _

</llo_original>
